<compile_context>
chip_gen: v6e
topology: v6e:2x2x1
jax: 0.10.0
libtpu: 0.0.40
codegen_flags: <defaults>
</compile_context>

<pallas_src>
import functools

import jax
import jax.numpy as jnp
from jax.experimental import pallas as pl
from jax.experimental.pallas import tpu as pltpu

# ----------------------------------------------------------------------------
# Layer sizes from the PyTorch module.
INPUT_SIZE = 171
OUTPUT_SIZE = 96
LAYER_SIZES = [INPUT_SIZE, 159, 128, 100, 80, 60, 45, 70, OUTPUT_SIZE]
NUM_LAYERS = len(LAYER_SIZES) - 1

LANE = 128
H0_PAD = 256     # layer-0 output width: 159 -> 256 lanes
NARROW = 128     # layers 1..8 output widths: all <= 128 -> 128 lanes
OUT_PAD = NARROW # kernel output lane width (real 96 cols sliced off outside)


def _round_up(x, m):
    return (x + m - 1) // m * m


def _cdiv(a, b):
    return -(-a // b)


# ----------------------------------------------------------------------------
# Kernel: one batch tile through all 8 layers; weights resident in VMEM.
def _mlp_kernel(x_ref, w0_ref, w1_ref, wr_ref, b_ref, o_ref):
    compute_dtype = w0_ref.dtype

    # Layer 0: (tile_b, 171) @ (171, 256).  K=171 -- Mosaic pads the contraction
    # dim internally, so x needs no host-side lane padding.  Cast to the compute
    # dtype (weight dtype) happens in-kernel, avoiding a separate XLA cast pass.
    h = x_ref[...].astype(compute_dtype)
    acc = jnp.dot(h, w0_ref[...], preferred_element_type=jnp.float32)
    acc = acc + b_ref[0, :, :].astype(jnp.float32)            # fused bias epilogue
    h = jnp.maximum(acc, 0.0).astype(compute_dtype)            # ReLU, (tile_b, 256)

    # Layer 1: (tile_b, 256) @ (256, 128).
    acc = jnp.dot(h, w1_ref[...], preferred_element_type=jnp.float32)
    acc = acc + b_ref[1, :, :NARROW].astype(jnp.float32)
    h = jnp.maximum(acc, 0.0).astype(compute_dtype)            # (tile_b, 128)

    # Layers 2..7: (tile_b, 128) @ (128, 128).  Final layer: no ReLU.
    for j in range(NUM_LAYERS - 2):
        layer = j + 2
        acc = jnp.dot(h, wr_ref[j], preferred_element_type=jnp.float32)
        acc = acc + b_ref[layer, :, :NARROW].astype(jnp.float32)
        if layer < NUM_LAYERS - 1:
            h = jnp.maximum(acc, 0.0).astype(compute_dtype)
        else:
            h = acc                                            # last layer stays f32

    o_ref[...] = h.astype(o_ref.dtype)


# ----------------------------------------------------------------------------
# Wrapper.
@functools.partial(jax.jit,
                   static_argnames=("batch_tile", "min_grid_steps", "out_dtype"))
def deeper_sparse_point_assoc_forward(x, params, batch_tile=512, min_grid_steps=1,
                                      out_dtype=jnp.float32):
    """Forward pass.

    x: (B, 171), any float dtype (cast to the weight dtype inside the kernel).
    params = (w0, w1, w_rest, b):
        w0: (171, 256), w1: (256, 128), w_rest: (6, 128, 128)   [stored (in, out),
        i.e. transposed vs PyTorch, zero-padded],  b: (8, 1, 256) f32.
    batch_tile: target rows per grid step (sweep 256..1024; bigger amortizes
        per-step overhead and MXU drain bubbles).
    min_grid_steps: set >= 2 on v7x so both TensorCores get grid steps.
    out_dtype: jnp.float32 (exact) or jnp.bfloat16 (halves writeback).
    """
    w0, w1, wr, b = params
    B, F = x.shape
    assert F == INPUT_SIZE

    # Tile selection: multiple of 8 sublanes, < 8 rows of slack, at least
    # `min_grid_steps` grid steps (but never more steps than ceil(B / 8)).
    batch_tile = max(8, _round_up(batch_tile, 8))
    n_steps = max(_cdiv(B, batch_tile), min(min_grid_steps, _cdiv(B, 8)))
    tile_b = _round_up(_cdiv(B, n_steps), 8)
    grid = _cdiv(B, tile_b)

    out = pl.pallas_call(
        _mlp_kernel,
        out_shape=jax.ShapeDtypeStruct((B, OUT_PAD), out_dtype),
        grid_spec=pl.GridSpec(
            grid=(grid,),
            in_specs=[
                # Activations: tiled over batch; last dim = full 171 (no pad).
                pl.BlockSpec((tile_b, INPUT_SIZE), lambda i: (i, 0)),
                # Grid-invariant weight / bias blocks: DMA'd once (constant
                # index_map => no re-fetch across grid steps).
                pl.BlockSpec(w0.shape, lambda i: (0, 0)),
                pl.BlockSpec(w1.shape, lambda i: (0, 0)),
                pl.BlockSpec(wr.shape, lambda i: (0, 0, 0)),
                pl.BlockSpec(b.shape, lambda i: (0, 0, 0)),
            ],
            out_specs=pl.BlockSpec((tile_b, OUT_PAD), lambda i: (i, 0)),
        ),
        compiler_params=pltpu.CompilerParams(
            dimension_semantics=("parallel",),
        ),
    )(x, w0, w1, wr, b)

    # Lane-dense 128-wide kernel output; real 96 columns sliced off here.
    return out[:, :OUTPUT_SIZE]


# ----------------------------------------------------------------------------
# Parameter init (PyTorch nn.Linear style U(-1/sqrt(fan_in), +1/sqrt(fan_in))),
# packed into tight zero-padded slabs.  Zero padding is exact through ReLU.
def init_params(key):
    w0 = jnp.zeros((INPUT_SIZE, H0_PAD), jnp.float32)          # (171, 256)
    w1 = jnp.zeros((H0_PAD, NARROW), jnp.float32)               # (256, 128)
    wr = jnp.zeros((NUM_LAYERS - 2, NARROW, NARROW), jnp.float32)  # (6, 128, 128)
    b = jnp.zeros((NUM_LAYERS, 1, H0_PAD), jnp.float32)         # (8, 1, 256)
    raw = []
    for layer in range(NUM_LAYERS):
        fan_in, fan_out = LAYER_SIZES[layer], LAYER_SIZES[layer + 1]
        key, kw, kb = jax.random.split(key, 3)
        bound = 1.0 / (fan_in ** 0.5)
        w = jax.random.uniform(kw, (fan_in, fan_out), jnp.float32, -bound, bound)
        bias = jax.random.uniform(kb, (fan_out,), jnp.float32, -bound, bound)
        raw.append((w, bias))
        if layer == 0:
            w0 = w0.at[:, :fan_out].set(w)
        elif layer == 1:
            w1 = w1.at[:fan_in, :fan_out].set(w)
        else:
            wr = wr.at[layer - 2, :fan_in, :fan_out].set(w)
        b = b.at[layer, 0, :fan_out].set(bias)
    return (w0, w1, wr, b), raw


def reference_forward(x, raw_params):
    """Pure-JAX reference on the unpadded parameters (f32, highest precision)."""
    h = x
    for layer, (w, bias) in enumerate(raw_params):
        h = jnp.dot(h, w, precision=jax.lax.Precision.HIGHEST) + bias
        if layer < NUM_LAYERS - 1:
            h = jnp.maximum(h, 0.0)
    return h


# ----------------------------------------------------------------------------
if __name__ == "__main__":
    key = jax.random.PRNGKey(0)
    key, kx = jax.random.split(key)

    B = 19  # non-multiple of 8: exercises the masked partial trailing block
    x = jax.random.normal(kx, (B, INPUT_SIZE), jnp.float32)
    params, raw = init_params(key)

    ref = reference_forward(x, raw)

    # f32 weights: exact vs. reference (single grid step, partial block).
    out_f32 = deeper_sparse_point_assoc_forward(x, params)
    out_f32 = jax.block_until_ready(out_f32)
    assert out_f32.shape == (B, OUTPUT_SIZE), out_f32.shape
    assert jnp.allclose(out_f32, ref, atol=1e-4, rtol=1e-4), "f32 mismatch vs reference"

    # bf16 weights/activations (fast path on v5e/v6e/v7x), f32 biases/accumulation;
    # min_grid_steps=2 also exercises the multi-step (dual-TensorCore) path.
    w0, w1, wr, b = params
    params_bf16 = (w0.astype(jnp.bfloat16), w1.astype(jnp.bfloat16),
                   wr.astype(jnp.bfloat16), b)
    out_bf16 = deeper_sparse_point_assoc_forward(x, params_bf16, min_grid_steps=2)
    out_bf16 = jax.block_until_ready(out_bf16)
    assert out_bf16.shape == (B, OUTPUT_SIZE), out_bf16.shape
    max_err = float(jnp.max(jnp.abs(out_bf16.astype(jnp.float32) - ref)))
    assert max_err < 1e-1, f"bf16 path error too large: {max_err}"

    print("KERNEL_OK")
</pallas_src>

<mosaic_0001>
module attributes {stable_mosaic.version = 11 : i64} {
  func.func @_mlp_kernel(%arg0: i32, %arg1: memref<24x171xf32, #tpu.memory_space<vmem>>, %arg2: memref<171x256xf32, #tpu.memory_space<vmem>>, %arg3: memref<256x128xf32, #tpu.memory_space<vmem>>, %arg4: memref<6x128x128xf32, #tpu.memory_space<vmem>>, %arg5: memref<8x1x256xf32, #tpu.memory_space<vmem>>, %arg6: memref<24x128xf32, #tpu.memory_space<vmem>>) attributes {dimension_semantics = [#tpu.dimension_semantics<parallel>], iteration_bounds = array<i64: 1>, scalar_prefetch = 0 : i64, scratch_operands = 0 : i64, tpu.core_type = #tpu.core_type<tc>, window_params = [{transform_indices = @transform_0, window_bounds = array<i64: 24, 171>}, {pipeline_mode = #tpu.pipeline_mode<synchronous>, transform_indices = @transform_1, window_bounds = array<i64: 171, 256>}, {pipeline_mode = #tpu.pipeline_mode<synchronous>, transform_indices = @transform_2, window_bounds = array<i64: 256, 128>}, {pipeline_mode = #tpu.pipeline_mode<synchronous>, transform_indices = @transform_3, window_bounds = array<i64: 6, 128, 128>}, {pipeline_mode = #tpu.pipeline_mode<synchronous>, transform_indices = @transform_4, window_bounds = array<i64: 8, 1, 256>}, {transform_indices = @transform_5, window_bounds = array<i64: 24, 128>}]} {
    %c0 = arith.constant 0 : index
    %c0_0 = arith.constant 0 : index
    %0 = vector.load %arg1[%c0, %c0_0] : memref<24x171xf32, #tpu.memory_space<vmem>>, vector<24x171xf32>
    %c0_1 = arith.constant 0 : index
    %c0_2 = arith.constant 0 : index
    %1 = vector.load %arg2[%c0_1, %c0_2] : memref<171x256xf32, #tpu.memory_space<vmem>>, vector<171x256xf32>
    %cst = arith.constant dense<0.000000e+00> : vector<24x256xf32>
    %2 = tpu.matmul %0, %1, %cst {dimension_numbers = #tpu.dot_dimension_numbers<[1], [0], [0], [1], [0, 0, 1, 1], [], []>} : vector<24x171xf32>, vector<171x256xf32>, vector<24x256xf32> -> vector<24x256xf32>
    %c0_3 = arith.constant 0 : index
    %c0_4 = arith.constant 0 : index
    %c0_5 = arith.constant 0 : index
    %3 = vector.load %arg5[%c0_3, %c0_4, %c0_5] : memref<8x1x256xf32, #tpu.memory_space<vmem>>, vector<1x1x256xf32>
    %4 = vector.shape_cast %3 : vector<1x1x256xf32> to vector<1x256xf32>
    %5 = vector.broadcast %4 : vector<1x256xf32> to vector<24x256xf32>
    %6 = arith.addf %2, %5 : vector<24x256xf32>
    %cst_6 = arith.constant 0.000000e+00 : f32
    %7 = vector.broadcast %cst_6 : f32 to vector<24x256xf32>
    %8 = arith.maximumf %6, %7 : vector<24x256xf32>
    %c0_7 = arith.constant 0 : index
    %c0_8 = arith.constant 0 : index
    %9 = vector.load %arg3[%c0_7, %c0_8] : memref<256x128xf32, #tpu.memory_space<vmem>>, vector<256x128xf32>
    %cst_9 = arith.constant dense<0.000000e+00> : vector<24x128xf32>
    %10 = tpu.matmul %8, %9, %cst_9 {dimension_numbers = #tpu.dot_dimension_numbers<[1], [0], [0], [1], [0, 0, 1, 1], [], []>} : vector<24x256xf32>, vector<256x128xf32>, vector<24x128xf32> -> vector<24x128xf32>
    %c1 = arith.constant 1 : index
    %c0_10 = arith.constant 0 : index
    %c0_11 = arith.constant 0 : index
    %11 = vector.load %arg5[%c1, %c0_10, %c0_11] : memref<8x1x256xf32, #tpu.memory_space<vmem>>, vector<1x1x128xf32>
    %12 = vector.shape_cast %11 : vector<1x1x128xf32> to vector<1x128xf32>
    %13 = vector.broadcast %12 : vector<1x128xf32> to vector<24x128xf32>
    %14 = arith.addf %10, %13 : vector<24x128xf32>
    %cst_12 = arith.constant 0.000000e+00 : f32
    %15 = vector.broadcast %cst_12 : f32 to vector<24x128xf32>
    %16 = arith.maximumf %14, %15 : vector<24x128xf32>
    %c0_13 = arith.constant 0 : index
    %c0_14 = arith.constant 0 : index
    %c0_15 = arith.constant 0 : index
    %17 = vector.load %arg4[%c0_13, %c0_14, %c0_15] : memref<6x128x128xf32, #tpu.memory_space<vmem>>, vector<1x128x128xf32>
    %18 = vector.shape_cast %17 : vector<1x128x128xf32> to vector<128x128xf32>
    %cst_16 = arith.constant dense<0.000000e+00> : vector<24x128xf32>
    %19 = tpu.matmul %16, %18, %cst_16 {dimension_numbers = #tpu.dot_dimension_numbers<[1], [0], [0], [1], [0, 0, 1, 1], [], []>} : vector<24x128xf32>, vector<128x128xf32>, vector<24x128xf32> -> vector<24x128xf32>
    %c2 = arith.constant 2 : index
    %c0_17 = arith.constant 0 : index
    %c0_18 = arith.constant 0 : index
    %20 = vector.load %arg5[%c2, %c0_17, %c0_18] : memref<8x1x256xf32, #tpu.memory_space<vmem>>, vector<1x1x128xf32>
    %21 = vector.shape_cast %20 : vector<1x1x128xf32> to vector<1x128xf32>
    %22 = vector.broadcast %21 : vector<1x128xf32> to vector<24x128xf32>
    %23 = arith.addf %19, %22 : vector<24x128xf32>
    %cst_19 = arith.constant 0.000000e+00 : f32
    %24 = vector.broadcast %cst_19 : f32 to vector<24x128xf32>
    %25 = arith.maximumf %23, %24 : vector<24x128xf32>
    %c1_20 = arith.constant 1 : index
    %c0_21 = arith.constant 0 : index
    %c0_22 = arith.constant 0 : index
    %26 = vector.load %arg4[%c1_20, %c0_21, %c0_22] : memref<6x128x128xf32, #tpu.memory_space<vmem>>, vector<1x128x128xf32>
    %27 = vector.shape_cast %26 : vector<1x128x128xf32> to vector<128x128xf32>
    %cst_23 = arith.constant dense<0.000000e+00> : vector<24x128xf32>
    %28 = tpu.matmul %25, %27, %cst_23 {dimension_numbers = #tpu.dot_dimension_numbers<[1], [0], [0], [1], [0, 0, 1, 1], [], []>} : vector<24x128xf32>, vector<128x128xf32>, vector<24x128xf32> -> vector<24x128xf32>
    %c3 = arith.constant 3 : index
    %c0_24 = arith.constant 0 : index
    %c0_25 = arith.constant 0 : index
    %29 = vector.load %arg5[%c3, %c0_24, %c0_25] : memref<8x1x256xf32, #tpu.memory_space<vmem>>, vector<1x1x128xf32>
    %30 = vector.shape_cast %29 : vector<1x1x128xf32> to vector<1x128xf32>
    %31 = vector.broadcast %30 : vector<1x128xf32> to vector<24x128xf32>
    %32 = arith.addf %28, %31 : vector<24x128xf32>
    %cst_26 = arith.constant 0.000000e+00 : f32
    %33 = vector.broadcast %cst_26 : f32 to vector<24x128xf32>
    %34 = arith.maximumf %32, %33 : vector<24x128xf32>
    %c2_27 = arith.constant 2 : index
    %c0_28 = arith.constant 0 : index
    %c0_29 = arith.constant 0 : index
    %35 = vector.load %arg4[%c2_27, %c0_28, %c0_29] : memref<6x128x128xf32, #tpu.memory_space<vmem>>, vector<1x128x128xf32>
    %36 = vector.shape_cast %35 : vector<1x128x128xf32> to vector<128x128xf32>
    %cst_30 = arith.constant dense<0.000000e+00> : vector<24x128xf32>
    %37 = tpu.matmul %34, %36, %cst_30 {dimension_numbers = #tpu.dot_dimension_numbers<[1], [0], [0], [1], [0, 0, 1, 1], [], []>} : vector<24x128xf32>, vector<128x128xf32>, vector<24x128xf32> -> vector<24x128xf32>
    %c4 = arith.constant 4 : index
    %c0_31 = arith.constant 0 : index
    %c0_32 = arith.constant 0 : index
    %38 = vector.load %arg5[%c4, %c0_31, %c0_32] : memref<8x1x256xf32, #tpu.memory_space<vmem>>, vector<1x1x128xf32>
    %39 = vector.shape_cast %38 : vector<1x1x128xf32> to vector<1x128xf32>
    %40 = vector.broadcast %39 : vector<1x128xf32> to vector<24x128xf32>
    %41 = arith.addf %37, %40 : vector<24x128xf32>
    %cst_33 = arith.constant 0.000000e+00 : f32
    %42 = vector.broadcast %cst_33 : f32 to vector<24x128xf32>
    %43 = arith.maximumf %41, %42 : vector<24x128xf32>
    %c3_34 = arith.constant 3 : index
    %c0_35 = arith.constant 0 : index
    %c0_36 = arith.constant 0 : index
    %44 = vector.load %arg4[%c3_34, %c0_35, %c0_36] : memref<6x128x128xf32, #tpu.memory_space<vmem>>, vector<1x128x128xf32>
    %45 = vector.shape_cast %44 : vector<1x128x128xf32> to vector<128x128xf32>
    %cst_37 = arith.constant dense<0.000000e+00> : vector<24x128xf32>
    %46 = tpu.matmul %43, %45, %cst_37 {dimension_numbers = #tpu.dot_dimension_numbers<[1], [0], [0], [1], [0, 0, 1, 1], [], []>} : vector<24x128xf32>, vector<128x128xf32>, vector<24x128xf32> -> vector<24x128xf32>
    %c5 = arith.constant 5 : index
    %c0_38 = arith.constant 0 : index
    %c0_39 = arith.constant 0 : index
    %47 = vector.load %arg5[%c5, %c0_38, %c0_39] : memref<8x1x256xf32, #tpu.memory_space<vmem>>, vector<1x1x128xf32>
    %48 = vector.shape_cast %47 : vector<1x1x128xf32> to vector<1x128xf32>
    %49 = vector.broadcast %48 : vector<1x128xf32> to vector<24x128xf32>
    %50 = arith.addf %46, %49 : vector<24x128xf32>
    %cst_40 = arith.constant 0.000000e+00 : f32
    %51 = vector.broadcast %cst_40 : f32 to vector<24x128xf32>
    %52 = arith.maximumf %50, %51 : vector<24x128xf32>
    %c4_41 = arith.constant 4 : index
    %c0_42 = arith.constant 0 : index
    %c0_43 = arith.constant 0 : index
    %53 = vector.load %arg4[%c4_41, %c0_42, %c0_43] : memref<6x128x128xf32, #tpu.memory_space<vmem>>, vector<1x128x128xf32>
    %54 = vector.shape_cast %53 : vector<1x128x128xf32> to vector<128x128xf32>
    %cst_44 = arith.constant dense<0.000000e+00> : vector<24x128xf32>
    %55 = tpu.matmul %52, %54, %cst_44 {dimension_numbers = #tpu.dot_dimension_numbers<[1], [0], [0], [1], [0, 0, 1, 1], [], []>} : vector<24x128xf32>, vector<128x128xf32>, vector<24x128xf32> -> vector<24x128xf32>
    %c6 = arith.constant 6 : index
    %c0_45 = arith.constant 0 : index
    %c0_46 = arith.constant 0 : index
    %56 = vector.load %arg5[%c6, %c0_45, %c0_46] : memref<8x1x256xf32, #tpu.memory_space<vmem>>, vector<1x1x128xf32>
    %57 = vector.shape_cast %56 : vector<1x1x128xf32> to vector<1x128xf32>
    %58 = vector.broadcast %57 : vector<1x128xf32> to vector<24x128xf32>
    %59 = arith.addf %55, %58 : vector<24x128xf32>
    %cst_47 = arith.constant 0.000000e+00 : f32
    %60 = vector.broadcast %cst_47 : f32 to vector<24x128xf32>
    %61 = arith.maximumf %59, %60 : vector<24x128xf32>
    %c5_48 = arith.constant 5 : index
    %c0_49 = arith.constant 0 : index
    %c0_50 = arith.constant 0 : index
    %62 = vector.load %arg4[%c5_48, %c0_49, %c0_50] : memref<6x128x128xf32, #tpu.memory_space<vmem>>, vector<1x128x128xf32>
    %63 = vector.shape_cast %62 : vector<1x128x128xf32> to vector<128x128xf32>
    %cst_51 = arith.constant dense<0.000000e+00> : vector<24x128xf32>
    %64 = tpu.matmul %61, %63, %cst_51 {dimension_numbers = #tpu.dot_dimension_numbers<[1], [0], [0], [1], [0, 0, 1, 1], [], []>} : vector<24x128xf32>, vector<128x128xf32>, vector<24x128xf32> -> vector<24x128xf32>
    %c7 = arith.constant 7 : index
    %c0_52 = arith.constant 0 : index
    %c0_53 = arith.constant 0 : index
    %65 = vector.load %arg5[%c7, %c0_52, %c0_53] : memref<8x1x256xf32, #tpu.memory_space<vmem>>, vector<1x1x128xf32>
    %66 = vector.shape_cast %65 : vector<1x1x128xf32> to vector<1x128xf32>
    %67 = vector.broadcast %66 : vector<1x128xf32> to vector<24x128xf32>
    %68 = arith.addf %64, %67 : vector<24x128xf32>
    %c0_54 = arith.constant 0 : index
    %c0_55 = arith.constant 0 : index
    %69 = vector.load %arg6[%c0_54, %c0_55] : memref<24x128xf32, #tpu.memory_space<vmem>>, vector<24x128xf32>
    tpu.vector_store %arg6[%c0_54, %c0_55], %68 {strides = array<i32>} : memref<24x128xf32, #tpu.memory_space<vmem>>, vector<24x128xf32>,
    return
  }
  func.func @transform_0(%arg0: i32) -> (i32, i32) {
    %c0_i32 = arith.constant 0 : i32
    %c0_i32_0 = arith.constant 0 : i32
    return %arg0, %c0_i32 : i32, i32
  }
  func.func @transform_1(%arg0: i32) -> (i32, i32) {
    %c0_i32 = arith.constant 0 : i32
    %c0_i32_0 = arith.constant 0 : i32
    %c0_i32_1 = arith.constant 0 : i32
    return %c0_i32, %c0_i32_0 : i32, i32
  }
  func.func @transform_2(%arg0: i32) -> (i32, i32) {
    %c0_i32 = arith.constant 0 : i32
    %c0_i32_0 = arith.constant 0 : i32
    %c0_i32_1 = arith.constant 0 : i32
    return %c0_i32, %c0_i32_0 : i32, i32
  }
  func.func @transform_3(%arg0: i32) -> (i32, i32, i32) {
    %c0_i32 = arith.constant 0 : i32
    %c0_i32_0 = arith.constant 0 : i32
    %c0_i32_1 = arith.constant 0 : i32
    %c0_i32_2 = arith.constant 0 : i32
    return %c0_i32, %c0_i32_0, %c0_i32_1 : i32, i32, i32
  }
  func.func @transform_4(%arg0: i32) -> (i32, i32, i32) {
    %c0_i32 = arith.constant 0 : i32
    %c0_i32_0 = arith.constant 0 : i32
    %c0_i32_1 = arith.constant 0 : i32
    %c0_i32_2 = arith.constant 0 : i32
    return %c0_i32, %c0_i32_0, %c0_i32_1 : i32, i32, i32
  }
  func.func @transform_5(%arg0: i32) -> (i32, i32) {
    %c0_i32 = arith.constant 0 : i32
    %c0_i32_0 = arith.constant 0 : i32
    return %arg0, %c0_i32 : i32, i32
  }
}

</mosaic_0001>

<llo_original>
// kernel: deeper_sparse_point_assoc_forward.1
$region0: #{deeper_sparse_point_assoc_forward.1}
  #allocation0 [shape = 'u32[]', space=smem, size = 0x4, offset = 0x4, fixed_abs, tag = 'smem constant byte address 0x4 - core index']
  #allocation1 [shape = 'u32[144,128]{1,0:T(1,128)}', space=vmem, size = 0x12000, scoped, tag = 'internal scratch']
  %s0 = inlined_call_operand.hbm [shape: f32[19,171], index: 0, kind: input, shape index: {}]
  %s1 = inlined_call_operand.hbm [shape: f32[171,256], index: 1, kind: input, shape index: {}]
  %s2 = inlined_call_operand.hbm [shape: f32[256,128], index: 2, kind: input, shape index: {}]
  %s3 = inlined_call_operand.hbm [shape: f32[6,128,128], index: 3, kind: input, shape index: {}]
  %s4 = inlined_call_operand.hbm [shape: f32[8,1,256], index: 4, kind: input, shape index: {}]
  %s5 = inlined_call_operand.hbm [shape: f32[19,128], index: 5, kind: output, shape index: {}]
  %s6 = sld [smem:[#allocation0]]
  $region50: #{deeper_sparse_point_assoc_forward.1} parent=0
    _
  %s8 = ssub.s32 1, %s6
  %s9 = scalar_select 0, %s8, %s6
  $region1: #{deeper_sparse_point_assoc_forward.1} parent=0
    #allocation2 [shape = 'u8[24576]{0}', space=vmem, size = 0x6000, scoped, tag = 'input window, operand 0, single buffered']
    #allocation3 [shape = 's32[1]{0}', space=sflag, size = 0x4, scoped, tag = 'scoped memory for deeper_sparse_point_assoc_forward.1']
    #allocation4 [shape = 's32[1]{0}', space=sflag, size = 0x4, scoped, tag = 'scoped memory for deeper_sparse_point_assoc_forward.1']
    #allocation5 [shape = 'u8[180224]{0}', space=vmem, size = 0x2c000, scoped, tag = 'input window, operand 1, single buffered']
    #allocation6 [shape = 's32[1]{0}', space=sflag, size = 0x4, scoped, tag = 'scoped memory for deeper_sparse_point_assoc_forward.1']
    #allocation7 [shape = 'u8[131072]{0}', space=vmem, size = 0x20000, scoped, tag = 'input window, operand 2, single buffered']
    #allocation8 [shape = 'u8[393216]{0}', space=vmem, size = 0x60000, scoped, tag = 'input window, operand 3, single buffered']
    #allocation9 [shape = 's32[1]{0}', space=sflag, size = 0x4, scoped, tag = 'scoped memory for deeper_sparse_point_assoc_forward.1']
    #allocation10 [shape = 'u8[8192]{0}', space=vmem, size = 0x2000, scoped, tag = 'input window, operand 4, single buffered']
    #allocation11 [shape = 'u8[12288]{0}', space=vmem, size = 0x3000, scoped, tag = 'output window, operand 0, single buffered']
    %10 = vsyncpa [#allocation3], 0
    %11 = vsyncpa [#allocation6], 0
    %12 = vsyncpa [#allocation9], 0
    %13 = vsyncpa [#allocation4], 0
    // Predicated region
    $region2: #{deeper_sparse_point_assoc_forward.1} parent=1 // pred_check
      _
    $region3: #{deeper_sparse_point_assoc_forward.1} parent=1 // pred_check_branch
      %15 = sbr.rel (0) target = $region5
    $region4: #{deeper_sparse_point_assoc_forward.1} parent=1 // pred_region
      %s17 = ssub.s32 768, 768
      %18 = vsyncadd [#allocation3], %s17
      %s19 = sshll.u32 [#allocation2], 4
      %s20 = int_to_ptr.vmem [resolvable:$true] %s19
      %25 = dma.hbm_to_vmem [thread:$0]  %s0, 768, %s20, [#allocation3], 256, 256, 16
    $region5: #{deeper_sparse_point_assoc_forward.1} parent=1 // pred_fallthru
      _
    // Predicated region
    $region6: #{deeper_sparse_point_assoc_forward.1} parent=1 // pred_check
      _
    $region7: #{deeper_sparse_point_assoc_forward.1} parent=1 // pred_check_branch
      %27 = sbr.rel (0) target = $region9
    $region8: #{deeper_sparse_point_assoc_forward.1} parent=1 // pred_region
      %s29 = ssub.s32 5632, 5632
      %30 = vsyncadd [#allocation6], %s29
      %s31 = sshll.u32 [#allocation5], 4
      %s32 = int_to_ptr.vmem [resolvable:$true] %s31
      %37 = dma.hbm_to_vmem [thread:$0]  %s1, 5632, %s32, [#allocation6], 256, 256, 16
    $region9: #{deeper_sparse_point_assoc_forward.1} parent=1 // pred_fallthru
      _
    // Predicated region
    $region10: #{deeper_sparse_point_assoc_forward.1} parent=1 // pred_check
      _
    $region11: #{deeper_sparse_point_assoc_forward.1} parent=1 // pred_check_branch
      %39 = sbr.rel (0) target = $region13
    $region12: #{deeper_sparse_point_assoc_forward.1} parent=1 // pred_region
      %s41 = ssub.s32 4096, 4096
      %42 = vsyncadd [#allocation6], %s41
      %s43 = sshll.u32 [#allocation7], 4
      %s44 = int_to_ptr.vmem [resolvable:$true] %s43
      %49 = dma.hbm_to_vmem [thread:$0]  %s2, 4096, %s44, [#allocation6], 128, 128, 8
    $region13: #{deeper_sparse_point_assoc_forward.1} parent=1 // pred_fallthru
      _
    // Predicated region
    $region14: #{deeper_sparse_point_assoc_forward.1} parent=1 // pred_check
      _
    $region15: #{deeper_sparse_point_assoc_forward.1} parent=1 // pred_check_branch
      %51 = sbr.rel (0) target = $region17
    $region16: #{deeper_sparse_point_assoc_forward.1} parent=1 // pred_region
      %s53 = ssub.s32 12288, 12288
      %54 = vsyncadd [#allocation9], %s53
      %s55 = sshll.u32 [#allocation8], 4
      %s56 = int_to_ptr.vmem [resolvable:$true] %s55
      %61 = dma.hbm_to_vmem [thread:$0]  %s3, 12288, %s56, [#allocation9], 128, 128, 8
    $region17: #{deeper_sparse_point_assoc_forward.1} parent=1 // pred_fallthru
      _
    // Predicated region
    $region18: #{deeper_sparse_point_assoc_forward.1} parent=1 // pred_check
      _
    $region19: #{deeper_sparse_point_assoc_forward.1} parent=1 // pred_check_branch
      %63 = sbr.rel (0) target = $region21
    $region20: #{deeper_sparse_point_assoc_forward.1} parent=1 // pred_region
      %s65 = ssub.s32 256, 256
      %66 = vsyncadd [#allocation9], %s65
      %s67 = sshll.u32 [#allocation10], 4
      %s68 = int_to_ptr.vmem [resolvable:$true] %s67
      %73 = dma.hbm_to_vmem [thread:$0]  %s4, 256, %s68, [#allocation9], 32, 32, 2
    $region21: #{deeper_sparse_point_assoc_forward.1} parent=1 // pred_fallthru
      _
    // Predicated region
    $region22: #{deeper_sparse_point_assoc_forward.1} parent=1 // pred_check
      _
    $region23: #{deeper_sparse_point_assoc_forward.1} parent=1 // pred_check_branch
      %75 = sbr.rel (0) target = $region25
    $region24: #{deeper_sparse_point_assoc_forward.1} parent=1 // pred_region
      %76 = dma.done [#allocation3], 768
    $region25: #{deeper_sparse_point_assoc_forward.1} parent=1 // pred_fallthru
      _
    // Predicated region
    $region26: #{deeper_sparse_point_assoc_forward.1} parent=1 // pred_check
      _
    $region27: #{deeper_sparse_point_assoc_forward.1} parent=1 // pred_check_branch
      %78 = sbr.rel (0) target = $region29
    $region28: #{deeper_sparse_point_assoc_forward.1} parent=1 // pred_region
      %79 = dma.done [#allocation6], 5632
    $region29: #{deeper_sparse_point_assoc_forward.1} parent=1 // pred_fallthru
      _
    // Predicated region
    $region30: #{deeper_sparse_point_assoc_forward.1} parent=1 // pred_check
      _
    $region31: #{deeper_sparse_point_assoc_forward.1} parent=1 // pred_check_branch
      %81 = sbr.rel (0) target = $region33
    $region32: #{deeper_sparse_point_assoc_forward.1} parent=1 // pred_region
      %82 = dma.done [#allocation6], 4096
    $region33: #{deeper_sparse_point_assoc_forward.1} parent=1 // pred_fallthru
      _
    // Predicated region
    $region34: #{deeper_sparse_point_assoc_forward.1} parent=1 // pred_check
      _
    $region35: #{deeper_sparse_point_assoc_forward.1} parent=1 // pred_check_branch
      %84 = sbr.rel (0) target = $region37
    $region36: #{deeper_sparse_point_assoc_forward.1} parent=1 // pred_region
      %85 = dma.done [#allocation9], 12288
    $region37: #{deeper_sparse_point_assoc_forward.1} parent=1 // pred_fallthru
      _
    // Predicated region
    $region38: #{deeper_sparse_point_assoc_forward.1} parent=1 // pred_check
      _
    $region39: #{deeper_sparse_point_assoc_forward.1} parent=1 // pred_check_branch
      %87 = sbr.rel (0) target = $region41
    $region40: #{deeper_sparse_point_assoc_forward.1} parent=1 // pred_region
      %88 = dma.done [#allocation9], 256
    $region41: #{deeper_sparse_point_assoc_forward.1} parent=1 // pred_fallthru
      _
    %v89 = vld [vmem:[#allocation2] sm:$0xff]
    %v90 = vld [vmem:[#allocation2 + $0x8] sm:$0xff]
    %v91 = vld [vmem:[#allocation2 + $0x10] sm:$0xff]
    %v92 = vld [vmem:[#allocation2 + $0x18] sm:$0xff]
    %v93 = vld [vmem:[#allocation2 + $0x20] sm:$0xff]
    %v94 = vld [vmem:[#allocation2 + $0x28] sm:$0xff]
    %v95 = vld [vmem:[#allocation5] sm:$0xff]
    %v96 = vld [vmem:[#allocation5 + $0x8] sm:$0xff]
    %v97 = vld [vmem:[#allocation5 + $0x10] sm:$0xff]
    %v98 = vld [vmem:[#allocation5 + $0x18] sm:$0xff]
    %v99 = vld [vmem:[#allocation5 + $0x20] sm:$0xff]
    %v100 = vld [vmem:[#allocation5 + $0x28] sm:$0xff]
    %v101 = vld [vmem:[#allocation5 + $0x30] sm:$0xff]
    %v102 = vld [vmem:[#allocation5 + $0x38] sm:$0xff]
    %v103 = vld [vmem:[#allocation5 + $0x40] sm:$0xff]
    %v104 = vld [vmem:[#allocation5 + $0x48] sm:$0xff]
    %v105 = vld [vmem:[#allocation5 + $0x50] sm:$0xff]
    %v106 = vld [vmem:[#allocation5 + $0x58] sm:$0xff]
    %v107 = vld [vmem:[#allocation5 + $0x60] sm:$0xff]
    %v108 = vld [vmem:[#allocation5 + $0x68] sm:$0xff]
    %v109 = vld [vmem:[#allocation5 + $0x70] sm:$0xff]
    %v110 = vld [vmem:[#allocation5 + $0x78] sm:$0xff]
    %v111 = vld [vmem:[#allocation5 + $0x80] sm:$0xff]
    %v112 = vld [vmem:[#allocation5 + $0x88] sm:$0xff]
    %v113 = vld [vmem:[#allocation5 + $0x90] sm:$0xff]
    %v114 = vld [vmem:[#allocation5 + $0x98] sm:$0xff]
    %v115 = vld [vmem:[#allocation5 + $0xa0] sm:$0xff]
    %v116 = vld [vmem:[#allocation5 + $0xa8] sm:$0xff]
    %v117 = vld [vmem:[#allocation5 + $0xb0] sm:$0xff]
    %v118 = vld [vmem:[#allocation5 + $0xb8] sm:$0xff]
    %v119 = vld [vmem:[#allocation5 + $0xc0] sm:$0xff]
    %v120 = vld [vmem:[#allocation5 + $0xc8] sm:$0xff]
    %v121 = vld [vmem:[#allocation5 + $0xd0] sm:$0xff]
    %v122 = vld [vmem:[#allocation5 + $0xd8] sm:$0xff]
    %v123 = vld [vmem:[#allocation5 + $0xe0] sm:$0xff]
    %v124 = vld [vmem:[#allocation5 + $0xe8] sm:$0xff]
    %v125 = vld [vmem:[#allocation5 + $0xf0] sm:$0xff]
    %v126 = vld [vmem:[#allocation5 + $0xf8] sm:$0xff]
    %v127 = vld [vmem:[#allocation5 + $0x100] sm:$0xff]
    %v128 = vld [vmem:[#allocation5 + $0x108] sm:$0xff]
    %v129 = vld [vmem:[#allocation5 + $0x110] sm:$0xff]
    %v130 = vld [vmem:[#allocation5 + $0x118] sm:$0xff]
    %v131 = vld [vmem:[#allocation5 + $0x120] sm:$0xff]
    %v132 = vld [vmem:[#allocation5 + $0x128] sm:$0xff]
    %v133 = vld [vmem:[#allocation5 + $0x130] sm:$0xff]
    %v134 = vld [vmem:[#allocation5 + $0x138] sm:$0xff]
    %v135 = vld [vmem:[#allocation5 + $0x140] sm:$0xff]
    %v136 = vld [vmem:[#allocation5 + $0x148] sm:$0xff]
    %v137 = vld [vmem:[#allocation5 + $0x150] sm:$0x7]
    %v138 = vld [vmem:[#allocation5 + $0x158] sm:$0x7]
    %v139 = vld [vmem:[#allocation10] sm:$0x3]
    %v141 = vlaneseq
    %v142 = vshrl.u32 %v141, 7
    %v143 = vsub.s32 0, %v142
    %v144 = vrot.slane %v139, %v143
    %v145 = vlaneseq
    %v146 = vshrl.u32 %v145, 7
    %v147 = vsub.s32 1, %v146
    %v148 = vrot.slane %v139, %v147
    %vm151 = vcmask 351232
    %v153 = vsel %vm151, %v90, 0
    %v156 = vsel %vm151, %v92, 0
    %v159 = vsel %vm151, %v94, 0
    %vm161 = vcmask 1042432
    %v163 = vsel %vm161, %v137, 0
    %v166 = vsel %vm161, %v138, 0
    %168 = vmatprep.subr.mxu0 %v126
    %169 = vmatpush1.msra.mxu0 %v125
    %170 = vmatprep.subr.mxu0 %v124
    %171 = vmatpush1.msra.mxu0 %v123
    %172 = vmatprep.subr.mxu0 %v122
    %173 = vmatpush1.msra.mxu0 %v121
    %174 = vmatprep.subr.mxu0 %v120
    %175 = vmatpush1.msra.mxu0 %v119
    %176 = vmatprep.subr.mxu0 %v118
    %177 = vmatpush1.msra.mxu0 %v117
    %178 = vmatprep.subr.mxu0 %v116
    %179 = vmatpush1.msra.mxu0 %v115
    %180 = vmatprep.subr.mxu0 %v114
    %181 = vmatpush1.msra.mxu0 %v113
    %182 = vmatprep.subr.mxu0 %v112
    %183 = vmatpush1.msra.mxu0 %v111
    %184 = vmatprep.subr.mxu0 %v110
    %185 = vmatpush1.msra.mxu0 %v109
    %186 = vmatprep.subr.mxu0 %v108
    %187 = vmatpush1.msra.mxu0 %v107
    %188 = vmatprep.subr.mxu0 %v106
    %189 = vmatpush1.msra.mxu0 %v105
    %190 = vmatprep.subr.mxu0 %v104
    %191 = vmatpush1.msra.mxu0 %v103
    %192 = vmatprep.subr.mxu0 %v102
    %193 = vmatpush1.msra.mxu0 %v101
    %194 = vmatprep.subr.mxu0 %v100
    %195 = vmatpush1.msra.mxu0 %v99
    %196 = vmatprep.subr.mxu0 %v98
    %197 = vmatpush1.msra.mxu0 %v97
    %198 = vmatprep.subr.mxu0 %v96
    %199 = vmatpush1.msra.mxu0 %v95
    %200 = vmatprep.subr.mxu0 0.0
    %201 = vmatpush2.msra.mxu0 0.0
    %202 = vmatprep.subr.mxu0 0.0
    %203 = vmatpush2.msra.mxu0 0.0
    %204 = vmatprep.subr.mxu0 0.0
    %205 = vmatpush2.msra.mxu0 0.0
    %206 = vmatprep.subr.mxu0 0.0
    %207 = vmatpush2.msra.mxu0 0.0
    %208 = vmatprep.subr.mxu0 0.0
    %209 = vmatpush2.msra.mxu0 0.0
    %210 = vmatprep.subr.mxu0 0.0
    %211 = vmatpush2.msra.mxu0 0.0
    %212 = vmatprep.subr.mxu0 0.0
    %213 = vmatpush2.msra.mxu0 0.0
    %214 = vmatprep.subr.mxu0 0.0
    %215 = vmatpush2.msra.mxu0 0.0
    %216 = vmatprep.subr.mxu0 0.0
    %217 = vmatpush2.msra.mxu0 0.0
    %218 = vmatprep.subr.mxu0 0.0
    %219 = vmatpush2.msra.mxu0 0.0
    %220 = vmatprep.subr.mxu0 %v166
    %221 = vmatpush2.msra.mxu0 %v163
    %222 = vmatprep.subr.mxu0 %v136
    %223 = vmatpush2.msra.mxu0 %v135
    %224 = vmatprep.subr.mxu0 %v134
    %225 = vmatpush2.msra.mxu0 %v133
    %226 = vmatprep.subr.mxu0 %v132
    %227 = vmatpush2.msra.mxu0 %v131
    %228 = vmatprep.subr.mxu0 %v130
    %229 = vmatpush2.msra.mxu0 %v129
    %230 = vmatprep.subr.mxu0 %v128
    %231 = vmatpush2.msra.mxu0 %v127
    %232 = vmatprep.mubr.f32.mxu0 %v153
    %233 = vmatmul.mubr.f32.gmra.mxu0 %v89
    %v234 = vpop.f32.mrf.mxu0
    %v235 = vadd.f32 %v144, %v234
    %v236 = vpop.f32.mrf.mxu0
    %v237 = vadd.f32 %v148, %v236
    %238 = vmatprep.mubr.f32.mxu0 %v156
    %239 = vmatmul.mubr.f32.gmra.mxu0 %v91
    %v240 = vpop.f32.mrf.mxu0
    %v241 = vadd.f32 %v144, %v240
    %v242 = vpop.f32.mrf.mxu0
    %v243 = vadd.f32 %v148, %v242
    %244 = vmatprep.mubr.f32.mxu0 %v159
    %245 = vmatmul.mubr.f32.gmra.mxu0 %v93
    %v246 = vpop.f32.mrf.mxu0
    %v247 = vadd.f32 %v144, %v246
    %v248 = vpop.f32.mrf.mxu0
    %v249 = vadd.f32 %v148, %v248
    %250 = vdwg.mxu0
    %v251 = vmax.f32 %v235, 0.0
    %v252 = vmax.f32 %v237, 0.0
    %v253 = vmax.f32 %v241, 0.0
    %v254 = vmax.f32 %v243, 0.0
    %v255 = vmax.f32 %v247, 0.0
    %v256 = vmax.f32 %v249, 0.0
    %v257 = vld [vmem:[#allocation7] sm:$0xff]
    %v258 = vld [vmem:[#allocation7 + $0x8] sm:$0xff]
    %v259 = vld [vmem:[#allocation7 + $0x10] sm:$0xff]
    %v260 = vld [vmem:[#allocation7 + $0x18] sm:$0xff]
    %v261 = vld [vmem:[#allocation7 + $0x20] sm:$0xff]
    %v262 = vld [vmem:[#allocation7 + $0x28] sm:$0xff]
    %v263 = vld [vmem:[#allocation7 + $0x30] sm:$0xff]
    %v264 = vld [vmem:[#allocation7 + $0x38] sm:$0xff]
    %v265 = vld [vmem:[#allocation7 + $0x40] sm:$0xff]
    %v266 = vld [vmem:[#allocation7 + $0x48] sm:$0xff]
    %v267 = vld [vmem:[#allocation7 + $0x50] sm:$0xff]
    %v268 = vld [vmem:[#allocation7 + $0x58] sm:$0xff]
    %v269 = vld [vmem:[#allocation7 + $0x60] sm:$0xff]
    %v270 = vld [vmem:[#allocation7 + $0x68] sm:$0xff]
    %v271 = vld [vmem:[#allocation7 + $0x70] sm:$0xff]
    %v272 = vld [vmem:[#allocation7 + $0x78] sm:$0xff]
    %v273 = vld [vmem:[#allocation7 + $0x80] sm:$0xff]
    %v274 = vld [vmem:[#allocation7 + $0x88] sm:$0xff]
    %v275 = vld [vmem:[#allocation7 + $0x90] sm:$0xff]
    %v276 = vld [vmem:[#allocation7 + $0x98] sm:$0xff]
    %v277 = vld [vmem:[#allocation7 + $0xa0] sm:$0xff]
    %v278 = vld [vmem:[#allocation7 + $0xa8] sm:$0xff]
    %v279 = vld [vmem:[#allocation7 + $0xb0] sm:$0xff]
    %v280 = vld [vmem:[#allocation7 + $0xb8] sm:$0xff]
    %v281 = vld [vmem:[#allocation7 + $0xc0] sm:$0xff]
    %v282 = vld [vmem:[#allocation7 + $0xc8] sm:$0xff]
    %v283 = vld [vmem:[#allocation7 + $0xd0] sm:$0xff]
    %v284 = vld [vmem:[#allocation7 + $0xd8] sm:$0xff]
    %v285 = vld [vmem:[#allocation7 + $0xe0] sm:$0xff]
    %v286 = vld [vmem:[#allocation7 + $0xe8] sm:$0xff]
    %v287 = vld [vmem:[#allocation7 + $0xf0] sm:$0xff]
    %v288 = vld [vmem:[#allocation7 + $0xf8] sm:$0xff]
    %s289 = scalar_lea.vmem [#allocation10], 2
    %v290 = vld [vmem:[%s289] sm:$0x1]
    %v292 = vlaneseq
    %v293 = vshrl.u32 %v292, 7
    %v294 = vsub.s32 0, %v293
    %v295 = vrot.slane %v290, %v294
    %297 = vmatprep.subr.mxu0 0.0
    %298 = vmatpush1.msra.mxu0 %v272
    %299 = vmatprep.subr.mxu0 0.0
    %300 = vmatpush1.msra.mxu0 %v271
    %301 = vmatprep.subr.mxu0 0.0
    %302 = vmatpush1.msra.mxu0 %v270
    %303 = vmatprep.subr.mxu0 0.0
    %304 = vmatpush1.msra.mxu0 %v269
    %305 = vmatprep.subr.mxu0 0.0
    %306 = vmatpush1.msra.mxu0 %v268
    %307 = vmatprep.subr.mxu0 0.0
    %308 = vmatpush1.msra.mxu0 %v267
    %309 = vmatprep.subr.mxu0 0.0
    %310 = vmatpush1.msra.mxu0 %v266
    %311 = vmatprep.subr.mxu0 0.0
    %312 = vmatpush1.msra.mxu0 %v265
    %313 = vmatprep.subr.mxu0 0.0
    %314 = vmatpush1.msra.mxu0 %v264
    %315 = vmatprep.subr.mxu0 0.0
    %316 = vmatpush1.msra.mxu0 %v263
    %317 = vmatprep.subr.mxu0 0.0
    %318 = vmatpush1.msra.mxu0 %v262
    %319 = vmatprep.subr.mxu0 0.0
    %320 = vmatpush1.msra.mxu0 %v261
    %321 = vmatprep.subr.mxu0 0.0
    %322 = vmatpush1.msra.mxu0 %v260
    %323 = vmatprep.subr.mxu0 0.0
    %324 = vmatpush1.msra.mxu0 %v259
    %325 = vmatprep.subr.mxu0 0.0
    %326 = vmatpush1.msra.mxu0 %v258
    %327 = vmatprep.subr.mxu0 0.0
    %328 = vmatpush1.msra.mxu0 %v257
    %329 = vmatprep.subr.mxu0 0.0
    %330 = vmatpush2.msra.mxu0 %v288
    %331 = vmatprep.subr.mxu0 0.0
    %332 = vmatpush2.msra.mxu0 %v287
    %333 = vmatprep.subr.mxu0 0.0
    %334 = vmatpush2.msra.mxu0 %v286
    %335 = vmatprep.subr.mxu0 0.0
    %336 = vmatpush2.msra.mxu0 %v285
    %337 = vmatprep.subr.mxu0 0.0
    %338 = vmatpush2.msra.mxu0 %v284
    %339 = vmatprep.subr.mxu0 0.0
    %340 = vmatpush2.msra.mxu0 %v283
    %341 = vmatprep.subr.mxu0 0.0
    %342 = vmatpush2.msra.mxu0 %v282
    %343 = vmatprep.subr.mxu0 0.0
    %344 = vmatpush2.msra.mxu0 %v281
    %345 = vmatprep.subr.mxu0 0.0
    %346 = vmatpush2.msra.mxu0 %v280
    %347 = vmatprep.subr.mxu0 0.0
    %348 = vmatpush2.msra.mxu0 %v279
    %349 = vmatprep.subr.mxu0 0.0
    %350 = vmatpush2.msra.mxu0 %v278
    %351 = vmatprep.subr.mxu0 0.0
    %352 = vmatpush2.msra.mxu0 %v277
    %353 = vmatprep.subr.mxu0 0.0
    %354 = vmatpush2.msra.mxu0 %v276
    %355 = vmatprep.subr.mxu0 0.0
    %356 = vmatpush2.msra.mxu0 %v275
    %357 = vmatprep.subr.mxu0 0.0
    %358 = vmatpush2.msra.mxu0 %v274
    %359 = vmatprep.subr.mxu0 0.0
    %360 = vmatpush2.msra.mxu0 %v273
    %361 = vmatprep.mubr.f32.mxu0 %v252
    %362 = vmatmul.mubr.f32.gmra.mxu0 %v251
    %v363 = vpop.f32.mrf.mxu0
    %v364 = vadd.f32 %v295, %v363
    %v365 = vpop.f32.mrf.mxu0
    %366 = vmatprep.mubr.f32.mxu0 %v254
    %367 = vmatmul.mubr.f32.gmra.mxu0 %v253
    %v368 = vpop.f32.mrf.mxu0
    %v369 = vadd.f32 %v295, %v368
    %v370 = vpop.f32.mrf.mxu0
    %371 = vmatprep.mubr.f32.mxu0 %v256
    %372 = vmatmul.mubr.f32.gmra.mxu0 %v255
    %v373 = vpop.f32.mrf.mxu0
    %v374 = vadd.f32 %v295, %v373
    %v375 = vpop.f32.mrf.mxu0
    %376 = vdwg.mxu0
    %v377 = vmax.f32 %v364, 0.0
    %v378 = vmax.f32 %v369, 0.0
    %v379 = vmax.f32 %v374, 0.0
    %v380 = vld [vmem:[#allocation8] sm:$0xff]
    %v381 = vld [vmem:[#allocation8 + $0x8] sm:$0xff]
    %v382 = vld [vmem:[#allocation8 + $0x10] sm:$0xff]
    %v383 = vld [vmem:[#allocation8 + $0x18] sm:$0xff]
    %v384 = vld [vmem:[#allocation8 + $0x20] sm:$0xff]
    %v385 = vld [vmem:[#allocation8 + $0x28] sm:$0xff]
    %v386 = vld [vmem:[#allocation8 + $0x30] sm:$0xff]
    %v387 = vld [vmem:[#allocation8 + $0x38] sm:$0xff]
    %v388 = vld [vmem:[#allocation8 + $0x40] sm:$0xff]
    %v389 = vld [vmem:[#allocation8 + $0x48] sm:$0xff]
    %v390 = vld [vmem:[#allocation8 + $0x50] sm:$0xff]
    %v391 = vld [vmem:[#allocation8 + $0x58] sm:$0xff]
    %v392 = vld [vmem:[#allocation8 + $0x60] sm:$0xff]
    %v393 = vld [vmem:[#allocation8 + $0x68] sm:$0xff]
    %v394 = vld [vmem:[#allocation8 + $0x70] sm:$0xff]
    %v395 = vld [vmem:[#allocation8 + $0x78] sm:$0xff]
    %s396 = scalar_lea.vmem [#allocation10], 4
    %v397 = vld [vmem:[%s396] sm:$0x1]
    %v399 = vlaneseq
    %v400 = vshrl.u32 %v399, 7
    %v401 = vsub.s32 0, %v400
    %v402 = vrot.slane %v397, %v401
    %404 = vmatprep.subr.mxu0 0.0
    %405 = vmatpush1.msra.mxu0 %v395
    %406 = vmatprep.subr.mxu0 0.0
    %407 = vmatpush1.msra.mxu0 %v394
    %408 = vmatprep.subr.mxu0 0.0
    %409 = vmatpush1.msra.mxu0 %v393
    %410 = vmatprep.subr.mxu0 0.0
    %411 = vmatpush1.msra.mxu0 %v392
    %412 = vmatprep.subr.mxu0 0.0
    %413 = vmatpush1.msra.mxu0 %v391
    %414 = vmatprep.subr.mxu0 0.0
    %415 = vmatpush1.msra.mxu0 %v390
    %416 = vmatprep.subr.mxu0 0.0
    %417 = vmatpush1.msra.mxu0 %v389
    %418 = vmatprep.subr.mxu0 0.0
    %419 = vmatpush1.msra.mxu0 %v388
    %420 = vmatprep.subr.mxu0 0.0
    %421 = vmatpush1.msra.mxu0 %v387
    %422 = vmatprep.subr.mxu0 0.0
    %423 = vmatpush1.msra.mxu0 %v386
    %424 = vmatprep.subr.mxu0 0.0
    %425 = vmatpush1.msra.mxu0 %v385
    %426 = vmatprep.subr.mxu0 0.0
    %427 = vmatpush1.msra.mxu0 %v384
    %428 = vmatprep.subr.mxu0 0.0
    %429 = vmatpush1.msra.mxu0 %v383
    %430 = vmatprep.subr.mxu0 0.0
    %431 = vmatpush1.msra.mxu0 %v382
    %432 = vmatprep.subr.mxu0 0.0
    %433 = vmatpush1.msra.mxu0 %v381
    %434 = vmatprep.subr.mxu0 0.0
    %435 = vmatpush1.msra.mxu0 %v380
    %436 = vmatprep.subr.mxu0 0.0
    %437 = vmatpush2.msra.mxu0 0.0
    %438 = vmatprep.subr.mxu0 0.0
    %439 = vmatpush2.msra.mxu0 0.0
    %440 = vmatprep.subr.mxu0 0.0
    %441 = vmatpush2.msra.mxu0 0.0
    %442 = vmatprep.subr.mxu0 0.0
    %443 = vmatpush2.msra.mxu0 0.0
    %444 = vmatprep.subr.mxu0 0.0
    %445 = vmatpush2.msra.mxu0 0.0
    %446 = vmatprep.subr.mxu0 0.0
    %447 = vmatpush2.msra.mxu0 0.0
    %448 = vmatprep.subr.mxu0 0.0
    %449 = vmatpush2.msra.mxu0 0.0
    %450 = vmatprep.subr.mxu0 0.0
    %451 = vmatpush2.msra.mxu0 0.0
    %452 = vmatprep.subr.mxu0 0.0
    %453 = vmatpush2.msra.mxu0 0.0
    %454 = vmatprep.subr.mxu0 0.0
    %455 = vmatpush2.msra.mxu0 0.0
    %456 = vmatprep.subr.mxu0 0.0
    %457 = vmatpush2.msra.mxu0 0.0
    %458 = vmatprep.subr.mxu0 0.0
    %459 = vmatpush2.msra.mxu0 0.0
    %460 = vmatprep.subr.mxu0 0.0
    %461 = vmatpush2.msra.mxu0 0.0
    %462 = vmatprep.subr.mxu0 0.0
    %463 = vmatpush2.msra.mxu0 0.0
    %464 = vmatprep.subr.mxu0 0.0
    %465 = vmatpush2.msra.mxu0 0.0
    %466 = vmatprep.subr.mxu0 0.0
    %467 = vmatpush2.msra.mxu0 0.0
    %468 = vmatprep.mubr.f32.mxu0 0.0
    %469 = vmatmul.mubr.f32.gmra.mxu0 %v377
    %v470 = vpop.f32.mrf.mxu0
    %v471 = vadd.f32 %v402, %v470
    %v472 = vpop.f32.mrf.mxu0
    %473 = vmatprep.mubr.f32.mxu0 0.0
    %474 = vmatmul.mubr.f32.gmra.mxu0 %v378
    %v475 = vpop.f32.mrf.mxu0
    %v476 = vadd.f32 %v402, %v475
    %v477 = vpop.f32.mrf.mxu0
    %478 = vmatprep.mubr.f32.mxu0 0.0
    %479 = vmatmul.mubr.f32.gmra.mxu0 %v379
    %v480 = vpop.f32.mrf.mxu0
    %v481 = vadd.f32 %v402, %v480
    %v482 = vpop.f32.mrf.mxu0
    %483 = vdwg.mxu0
    %v484 = vmax.f32 %v471, 0.0
    %v485 = vmax.f32 %v476, 0.0
    %v486 = vmax.f32 %v481, 0.0
    %s487 = scalar_lea.vmem [#allocation8], 128
    %v488 = vld [vmem:[%s487] sm:$0xff]
    %v489 = vld [vmem:[%s487 + $0x8] sm:$0xff]
    %v490 = vld [vmem:[%s487 + $0x10] sm:$0xff]
    %v491 = vld [vmem:[%s487 + $0x18] sm:$0xff]
    %v492 = vld [vmem:[%s487 + $0x20] sm:$0xff]
    %v493 = vld [vmem:[%s487 + $0x28] sm:$0xff]
    %v494 = vld [vmem:[%s487 + $0x30] sm:$0xff]
    %v495 = vld [vmem:[%s487 + $0x38] sm:$0xff]
    %v496 = vld [vmem:[%s487 + $0x40] sm:$0xff]
    %v497 = vld [vmem:[%s487 + $0x48] sm:$0xff]
    %v498 = vld [vmem:[%s487 + $0x50] sm:$0xff]
    %v499 = vld [vmem:[%s487 + $0x58] sm:$0xff]
    %v500 = vld [vmem:[%s487 + $0x60] sm:$0xff]
    %v501 = vld [vmem:[%s487 + $0x68] sm:$0xff]
    %v502 = vld [vmem:[%s487 + $0x70] sm:$0xff]
    %v503 = vld [vmem:[%s487 + $0x78] sm:$0xff]
    %s504 = scalar_lea.vmem [#allocation10], 6
    %v505 = vld [vmem:[%s504] sm:$0x1]
    %v507 = vlaneseq
    %v508 = vshrl.u32 %v507, 7
    %v509 = vsub.s32 0, %v508
    %v510 = vrot.slane %v505, %v509
    %512 = vmatprep.subr.mxu0 0.0
    %513 = vmatpush1.msra.mxu0 %v503
    %514 = vmatprep.subr.mxu0 0.0
    %515 = vmatpush1.msra.mxu0 %v502
    %516 = vmatprep.subr.mxu0 0.0
    %517 = vmatpush1.msra.mxu0 %v501
    %518 = vmatprep.subr.mxu0 0.0
    %519 = vmatpush1.msra.mxu0 %v500
    %520 = vmatprep.subr.mxu0 0.0
    %521 = vmatpush1.msra.mxu0 %v499
    %522 = vmatprep.subr.mxu0 0.0
    %523 = vmatpush1.msra.mxu0 %v498
    %524 = vmatprep.subr.mxu0 0.0
    %525 = vmatpush1.msra.mxu0 %v497
    %526 = vmatprep.subr.mxu0 0.0
    %527 = vmatpush1.msra.mxu0 %v496
    %528 = vmatprep.subr.mxu0 0.0
    %529 = vmatpush1.msra.mxu0 %v495
    %530 = vmatprep.subr.mxu0 0.0
    %531 = vmatpush1.msra.mxu0 %v494
    %532 = vmatprep.subr.mxu0 0.0
    %533 = vmatpush1.msra.mxu0 %v493
    %534 = vmatprep.subr.mxu0 0.0
    %535 = vmatpush1.msra.mxu0 %v492
    %536 = vmatprep.subr.mxu0 0.0
    %537 = vmatpush1.msra.mxu0 %v491
    %538 = vmatprep.subr.mxu0 0.0
    %539 = vmatpush1.msra.mxu0 %v490
    %540 = vmatprep.subr.mxu0 0.0
    %541 = vmatpush1.msra.mxu0 %v489
    %542 = vmatprep.subr.mxu0 0.0
    %543 = vmatpush1.msra.mxu0 %v488
    %544 = vmatprep.subr.mxu0 0.0
    %545 = vmatpush2.msra.mxu0 0.0
    %546 = vmatprep.subr.mxu0 0.0
    %547 = vmatpush2.msra.mxu0 0.0
    %548 = vmatprep.subr.mxu0 0.0
    %549 = vmatpush2.msra.mxu0 0.0
    %550 = vmatprep.subr.mxu0 0.0
    %551 = vmatpush2.msra.mxu0 0.0
    %552 = vmatprep.subr.mxu0 0.0
    %553 = vmatpush2.msra.mxu0 0.0
    %554 = vmatprep.subr.mxu0 0.0
    %555 = vmatpush2.msra.mxu0 0.0
    %556 = vmatprep.subr.mxu0 0.0
    %557 = vmatpush2.msra.mxu0 0.0
    %558 = vmatprep.subr.mxu0 0.0
    %559 = vmatpush2.msra.mxu0 0.0
    %560 = vmatprep.subr.mxu0 0.0
    %561 = vmatpush2.msra.mxu0 0.0
    %562 = vmatprep.subr.mxu0 0.0
    %563 = vmatpush2.msra.mxu0 0.0
    %564 = vmatprep.subr.mxu0 0.0
    %565 = vmatpush2.msra.mxu0 0.0
    %566 = vmatprep.subr.mxu0 0.0
    %567 = vmatpush2.msra.mxu0 0.0
    %568 = vmatprep.subr.mxu0 0.0
    %569 = vmatpush2.msra.mxu0 0.0
    %570 = vmatprep.subr.mxu0 0.0
    %571 = vmatpush2.msra.mxu0 0.0
    %572 = vmatprep.subr.mxu0 0.0
    %573 = vmatpush2.msra.mxu0 0.0
    %574 = vmatprep.subr.mxu0 0.0
    %575 = vmatpush2.msra.mxu0 0.0
    %576 = vmatprep.mubr.f32.mxu0 0.0
    %577 = vmatmul.mubr.f32.gmra.mxu0 %v484
    %v578 = vpop.f32.mrf.mxu0
    %v579 = vadd.f32 %v510, %v578
    %v580 = vpop.f32.mrf.mxu0
    %581 = vmatprep.mubr.f32.mxu0 0.0
    %582 = vmatmul.mubr.f32.gmra.mxu0 %v485
    %v583 = vpop.f32.mrf.mxu0
    %v584 = vadd.f32 %v510, %v583
    %v585 = vpop.f32.mrf.mxu0
    %586 = vmatprep.mubr.f32.mxu0 0.0
    %587 = vmatmul.mubr.f32.gmra.mxu0 %v486
    %v588 = vpop.f32.mrf.mxu0
    %v589 = vadd.f32 %v510, %v588
    %v590 = vpop.f32.mrf.mxu0
    %591 = vdwg.mxu0
    %v592 = vmax.f32 %v579, 0.0
    %v593 = vmax.f32 %v584, 0.0
    %v594 = vmax.f32 %v589, 0.0
    %s595 = scalar_lea.vmem [#allocation8], 256
    %v596 = vld [vmem:[%s595] sm:$0xff]
    %v597 = vld [vmem:[%s595 + $0x8] sm:$0xff]
    %v598 = vld [vmem:[%s595 + $0x10] sm:$0xff]
    %v599 = vld [vmem:[%s595 + $0x18] sm:$0xff]
    %v600 = vld [vmem:[%s595 + $0x20] sm:$0xff]
    %v601 = vld [vmem:[%s595 + $0x28] sm:$0xff]
    %v602 = vld [vmem:[%s595 + $0x30] sm:$0xff]
    %v603 = vld [vmem:[%s595 + $0x38] sm:$0xff]
    %v604 = vld [vmem:[%s595 + $0x40] sm:$0xff]
    %v605 = vld [vmem:[%s595 + $0x48] sm:$0xff]
    %v606 = vld [vmem:[%s595 + $0x50] sm:$0xff]
    %v607 = vld [vmem:[%s595 + $0x58] sm:$0xff]
    %v608 = vld [vmem:[%s595 + $0x60] sm:$0xff]
    %v609 = vld [vmem:[%s595 + $0x68] sm:$0xff]
    %v610 = vld [vmem:[%s595 + $0x70] sm:$0xff]
    %v611 = vld [vmem:[%s595 + $0x78] sm:$0xff]
    %s612 = scalar_lea.vmem [#allocation10], 8
    %v613 = vld [vmem:[%s612] sm:$0x1]
    %v615 = vlaneseq
    %v616 = vshrl.u32 %v615, 7
    %v617 = vsub.s32 0, %v616
    %v618 = vrot.slane %v613, %v617
    %620 = vmatprep.subr.mxu0 0.0
    %621 = vmatpush1.msra.mxu0 %v611
    %622 = vmatprep.subr.mxu0 0.0
    %623 = vmatpush1.msra.mxu0 %v610
    %624 = vmatprep.subr.mxu0 0.0
    %625 = vmatpush1.msra.mxu0 %v609
    %626 = vmatprep.subr.mxu0 0.0
    %627 = vmatpush1.msra.mxu0 %v608
    %628 = vmatprep.subr.mxu0 0.0
    %629 = vmatpush1.msra.mxu0 %v607
    %630 = vmatprep.subr.mxu0 0.0
    %631 = vmatpush1.msra.mxu0 %v606
    %632 = vmatprep.subr.mxu0 0.0
    %633 = vmatpush1.msra.mxu0 %v605
    %634 = vmatprep.subr.mxu0 0.0
    %635 = vmatpush1.msra.mxu0 %v604
    %636 = vmatprep.subr.mxu0 0.0
    %637 = vmatpush1.msra.mxu0 %v603
    %638 = vmatprep.subr.mxu0 0.0
    %639 = vmatpush1.msra.mxu0 %v602
    %640 = vmatprep.subr.mxu0 0.0
    %641 = vmatpush1.msra.mxu0 %v601
    %642 = vmatprep.subr.mxu0 0.0
    %643 = vmatpush1.msra.mxu0 %v600
    %644 = vmatprep.subr.mxu0 0.0
    %645 = vmatpush1.msra.mxu0 %v599
    %646 = vmatprep.subr.mxu0 0.0
    %647 = vmatpush1.msra.mxu0 %v598
    %648 = vmatprep.subr.mxu0 0.0
    %649 = vmatpush1.msra.mxu0 %v597
    %650 = vmatprep.subr.mxu0 0.0
    %651 = vmatpush1.msra.mxu0 %v596
    %652 = vmatprep.subr.mxu0 0.0
    %653 = vmatpush2.msra.mxu0 0.0
    %654 = vmatprep.subr.mxu0 0.0
    %655 = vmatpush2.msra.mxu0 0.0
    %656 = vmatprep.subr.mxu0 0.0
    %657 = vmatpush2.msra.mxu0 0.0
    %658 = vmatprep.subr.mxu0 0.0
    %659 = vmatpush2.msra.mxu0 0.0
    %660 = vmatprep.subr.mxu0 0.0
    %661 = vmatpush2.msra.mxu0 0.0
    %662 = vmatprep.subr.mxu0 0.0
    %663 = vmatpush2.msra.mxu0 0.0
    %664 = vmatprep.subr.mxu0 0.0
    %665 = vmatpush2.msra.mxu0 0.0
    %666 = vmatprep.subr.mxu0 0.0
    %667 = vmatpush2.msra.mxu0 0.0
    %668 = vmatprep.subr.mxu0 0.0
    %669 = vmatpush2.msra.mxu0 0.0
    %670 = vmatprep.subr.mxu0 0.0
    %671 = vmatpush2.msra.mxu0 0.0
    %672 = vmatprep.subr.mxu0 0.0
    %673 = vmatpush2.msra.mxu0 0.0
    %674 = vmatprep.subr.mxu0 0.0
    %675 = vmatpush2.msra.mxu0 0.0
    %676 = vmatprep.subr.mxu0 0.0
    %677 = vmatpush2.msra.mxu0 0.0
    %678 = vmatprep.subr.mxu0 0.0
    %679 = vmatpush2.msra.mxu0 0.0
    %680 = vmatprep.subr.mxu0 0.0
    %681 = vmatpush2.msra.mxu0 0.0
    %682 = vmatprep.subr.mxu0 0.0
    %683 = vmatpush2.msra.mxu0 0.0
    %684 = vmatprep.mubr.f32.mxu0 0.0
    %685 = vmatmul.mubr.f32.gmra.mxu0 %v592
    %v686 = vpop.f32.mrf.mxu0
    %v687 = vadd.f32 %v618, %v686
    %v688 = vpop.f32.mrf.mxu0
    %689 = vmatprep.mubr.f32.mxu0 0.0
    %690 = vmatmul.mubr.f32.gmra.mxu0 %v593
    %v691 = vpop.f32.mrf.mxu0
    %v692 = vadd.f32 %v618, %v691
    %v693 = vpop.f32.mrf.mxu0
    %694 = vmatprep.mubr.f32.mxu0 0.0
    %695 = vmatmul.mubr.f32.gmra.mxu0 %v594
    %v696 = vpop.f32.mrf.mxu0
    %v697 = vadd.f32 %v618, %v696
    %v698 = vpop.f32.mrf.mxu0
    %699 = vdwg.mxu0
    %v700 = vmax.f32 %v687, 0.0
    %v701 = vmax.f32 %v692, 0.0
    %v702 = vmax.f32 %v697, 0.0
    %s703 = scalar_lea.vmem [#allocation8], 384
    %v704 = vld [vmem:[%s703] sm:$0xff]
    %v705 = vld [vmem:[%s703 + $0x8] sm:$0xff]
    %v706 = vld [vmem:[%s703 + $0x10] sm:$0xff]
    %v707 = vld [vmem:[%s703 + $0x18] sm:$0xff]
    %v708 = vld [vmem:[%s703 + $0x20] sm:$0xff]
    %v709 = vld [vmem:[%s703 + $0x28] sm:$0xff]
    %v710 = vld [vmem:[%s703 + $0x30] sm:$0xff]
    %v711 = vld [vmem:[%s703 + $0x38] sm:$0xff]
    %v712 = vld [vmem:[%s703 + $0x40] sm:$0xff]
    %v713 = vld [vmem:[%s703 + $0x48] sm:$0xff]
    %v714 = vld [vmem:[%s703 + $0x50] sm:$0xff]
    %v715 = vld [vmem:[%s703 + $0x58] sm:$0xff]
    %v716 = vld [vmem:[%s703 + $0x60] sm:$0xff]
    %v717 = vld [vmem:[%s703 + $0x68] sm:$0xff]
    %v718 = vld [vmem:[%s703 + $0x70] sm:$0xff]
    %v719 = vld [vmem:[%s703 + $0x78] sm:$0xff]
    %s720 = scalar_lea.vmem [#allocation10], 10
    %v721 = vld [vmem:[%s720] sm:$0x1]
    %v723 = vlaneseq
    %v724 = vshrl.u32 %v723, 7
    %v725 = vsub.s32 0, %v724
    %v726 = vrot.slane %v721, %v725
    %728 = vmatprep.subr.mxu0 0.0
    %729 = vmatpush1.msra.mxu0 %v719
    %730 = vmatprep.subr.mxu0 0.0
    %731 = vmatpush1.msra.mxu0 %v718
    %732 = vmatprep.subr.mxu0 0.0
    %733 = vmatpush1.msra.mxu0 %v717
    %734 = vmatprep.subr.mxu0 0.0
    %735 = vmatpush1.msra.mxu0 %v716
    %736 = vmatprep.subr.mxu0 0.0
    %737 = vmatpush1.msra.mxu0 %v715
    %738 = vmatprep.subr.mxu0 0.0
    %739 = vmatpush1.msra.mxu0 %v714
    %740 = vmatprep.subr.mxu0 0.0
    %741 = vmatpush1.msra.mxu0 %v713
    %742 = vmatprep.subr.mxu0 0.0
    %743 = vmatpush1.msra.mxu0 %v712
    %744 = vmatprep.subr.mxu0 0.0
    %745 = vmatpush1.msra.mxu0 %v711
    %746 = vmatprep.subr.mxu0 0.0
    %747 = vmatpush1.msra.mxu0 %v710
    %748 = vmatprep.subr.mxu0 0.0
    %749 = vmatpush1.msra.mxu0 %v709
    %750 = vmatprep.subr.mxu0 0.0
    %751 = vmatpush1.msra.mxu0 %v708
    %752 = vmatprep.subr.mxu0 0.0
    %753 = vmatpush1.msra.mxu0 %v707
    %754 = vmatprep.subr.mxu0 0.0
    %755 = vmatpush1.msra.mxu0 %v706
    %756 = vmatprep.subr.mxu0 0.0
    %757 = vmatpush1.msra.mxu0 %v705
    %758 = vmatprep.subr.mxu0 0.0
    %759 = vmatpush1.msra.mxu0 %v704
    %760 = vmatprep.subr.mxu0 0.0
    %761 = vmatpush2.msra.mxu0 0.0
    %762 = vmatprep.subr.mxu0 0.0
    %763 = vmatpush2.msra.mxu0 0.0
    %764 = vmatprep.subr.mxu0 0.0
    %765 = vmatpush2.msra.mxu0 0.0
    %766 = vmatprep.subr.mxu0 0.0
    %767 = vmatpush2.msra.mxu0 0.0
    %768 = vmatprep.subr.mxu0 0.0
    %769 = vmatpush2.msra.mxu0 0.0
    %770 = vmatprep.subr.mxu0 0.0
    %771 = vmatpush2.msra.mxu0 0.0
    %772 = vmatprep.subr.mxu0 0.0
    %773 = vmatpush2.msra.mxu0 0.0
    %774 = vmatprep.subr.mxu0 0.0
    %775 = vmatpush2.msra.mxu0 0.0
    %776 = vmatprep.subr.mxu0 0.0
    %777 = vmatpush2.msra.mxu0 0.0
    %778 = vmatprep.subr.mxu0 0.0
    %779 = vmatpush2.msra.mxu0 0.0
    %780 = vmatprep.subr.mxu0 0.0
    %781 = vmatpush2.msra.mxu0 0.0
    %782 = vmatprep.subr.mxu0 0.0
    %783 = vmatpush2.msra.mxu0 0.0
    %784 = vmatprep.subr.mxu0 0.0
    %785 = vmatpush2.msra.mxu0 0.0
    %786 = vmatprep.subr.mxu0 0.0
    %787 = vmatpush2.msra.mxu0 0.0
    %788 = vmatprep.subr.mxu0 0.0
    %789 = vmatpush2.msra.mxu0 0.0
    %790 = vmatprep.subr.mxu0 0.0
    %791 = vmatpush2.msra.mxu0 0.0
    %792 = vmatprep.mubr.f32.mxu0 0.0
    %793 = vmatmul.mubr.f32.gmra.mxu0 %v700
    %v794 = vpop.f32.mrf.mxu0
    %v795 = vadd.f32 %v726, %v794
    %v796 = vpop.f32.mrf.mxu0
    %797 = vmatprep.mubr.f32.mxu0 0.0
    %798 = vmatmul.mubr.f32.gmra.mxu0 %v701
    %v799 = vpop.f32.mrf.mxu0
    %v800 = vadd.f32 %v726, %v799
    %v801 = vpop.f32.mrf.mxu0
    %802 = vmatprep.mubr.f32.mxu0 0.0
    %803 = vmatmul.mubr.f32.gmra.mxu0 %v702
    %v804 = vpop.f32.mrf.mxu0
    %v805 = vadd.f32 %v726, %v804
    %v806 = vpop.f32.mrf.mxu0
    %807 = vdwg.mxu0
    %v808 = vmax.f32 %v795, 0.0
    %v809 = vmax.f32 %v800, 0.0
    %v810 = vmax.f32 %v805, 0.0
    %s811 = scalar_lea.vmem [#allocation8], 512
    %v812 = vld [vmem:[%s811] sm:$0xff]
    %v813 = vld [vmem:[%s811 + $0x8] sm:$0xff]
    %v814 = vld [vmem:[%s811 + $0x10] sm:$0xff]
    %v815 = vld [vmem:[%s811 + $0x18] sm:$0xff]
    %v816 = vld [vmem:[%s811 + $0x20] sm:$0xff]
    %v817 = vld [vmem:[%s811 + $0x28] sm:$0xff]
    %v818 = vld [vmem:[%s811 + $0x30] sm:$0xff]
    %v819 = vld [vmem:[%s811 + $0x38] sm:$0xff]
    %v820 = vld [vmem:[%s811 + $0x40] sm:$0xff]
    %v821 = vld [vmem:[%s811 + $0x48] sm:$0xff]
    %v822 = vld [vmem:[%s811 + $0x50] sm:$0xff]
    %v823 = vld [vmem:[%s811 + $0x58] sm:$0xff]
    %v824 = vld [vmem:[%s811 + $0x60] sm:$0xff]
    %v825 = vld [vmem:[%s811 + $0x68] sm:$0xff]
    %v826 = vld [vmem:[%s811 + $0x70] sm:$0xff]
    %v827 = vld [vmem:[%s811 + $0x78] sm:$0xff]
    %s828 = scalar_lea.vmem [#allocation10], 12
    %v829 = vld [vmem:[%s828] sm:$0x1]
    %v831 = vlaneseq
    %v832 = vshrl.u32 %v831, 7
    %v833 = vsub.s32 0, %v832
    %v834 = vrot.slane %v829, %v833
    %836 = vmatprep.subr.mxu0 0.0
    %837 = vmatpush1.msra.mxu0 %v827
    %838 = vmatprep.subr.mxu0 0.0
    %839 = vmatpush1.msra.mxu0 %v826
    %840 = vmatprep.subr.mxu0 0.0
    %841 = vmatpush1.msra.mxu0 %v825
    %842 = vmatprep.subr.mxu0 0.0
    %843 = vmatpush1.msra.mxu0 %v824
    %844 = vmatprep.subr.mxu0 0.0
    %845 = vmatpush1.msra.mxu0 %v823
    %846 = vmatprep.subr.mxu0 0.0
    %847 = vmatpush1.msra.mxu0 %v822
    %848 = vmatprep.subr.mxu0 0.0
    %849 = vmatpush1.msra.mxu0 %v821
    %850 = vmatprep.subr.mxu0 0.0
    %851 = vmatpush1.msra.mxu0 %v820
    %852 = vmatprep.subr.mxu0 0.0
    %853 = vmatpush1.msra.mxu0 %v819
    %854 = vmatprep.subr.mxu0 0.0
    %855 = vmatpush1.msra.mxu0 %v818
    %856 = vmatprep.subr.mxu0 0.0
    %857 = vmatpush1.msra.mxu0 %v817
    %858 = vmatprep.subr.mxu0 0.0
    %859 = vmatpush1.msra.mxu0 %v816
    %860 = vmatprep.subr.mxu0 0.0
    %861 = vmatpush1.msra.mxu0 %v815
    %862 = vmatprep.subr.mxu0 0.0
    %863 = vmatpush1.msra.mxu0 %v814
    %864 = vmatprep.subr.mxu0 0.0
    %865 = vmatpush1.msra.mxu0 %v813
    %866 = vmatprep.subr.mxu0 0.0
    %867 = vmatpush1.msra.mxu0 %v812
    %868 = vmatprep.subr.mxu0 0.0
    %869 = vmatpush2.msra.mxu0 0.0
    %870 = vmatprep.subr.mxu0 0.0
    %871 = vmatpush2.msra.mxu0 0.0
    %872 = vmatprep.subr.mxu0 0.0
    %873 = vmatpush2.msra.mxu0 0.0
    %874 = vmatprep.subr.mxu0 0.0
    %875 = vmatpush2.msra.mxu0 0.0
    %876 = vmatprep.subr.mxu0 0.0
    %877 = vmatpush2.msra.mxu0 0.0
    %878 = vmatprep.subr.mxu0 0.0
    %879 = vmatpush2.msra.mxu0 0.0
    %880 = vmatprep.subr.mxu0 0.0
    %881 = vmatpush2.msra.mxu0 0.0
    %882 = vmatprep.subr.mxu0 0.0
    %883 = vmatpush2.msra.mxu0 0.0
    %884 = vmatprep.subr.mxu0 0.0
    %885 = vmatpush2.msra.mxu0 0.0
    %886 = vmatprep.subr.mxu0 0.0
    %887 = vmatpush2.msra.mxu0 0.0
    %888 = vmatprep.subr.mxu0 0.0
    %889 = vmatpush2.msra.mxu0 0.0
    %890 = vmatprep.subr.mxu0 0.0
    %891 = vmatpush2.msra.mxu0 0.0
    %892 = vmatprep.subr.mxu0 0.0
    %893 = vmatpush2.msra.mxu0 0.0
    %894 = vmatprep.subr.mxu0 0.0
    %895 = vmatpush2.msra.mxu0 0.0
    %896 = vmatprep.subr.mxu0 0.0
    %897 = vmatpush2.msra.mxu0 0.0
    %898 = vmatprep.subr.mxu0 0.0
    %899 = vmatpush2.msra.mxu0 0.0
    %900 = vmatprep.mubr.f32.mxu0 0.0
    %901 = vmatmul.mubr.f32.gmra.mxu0 %v808
    %v902 = vpop.f32.mrf.mxu0
    %v903 = vadd.f32 %v834, %v902
    %v904 = vpop.f32.mrf.mxu0
    %905 = vmatprep.mubr.f32.mxu0 0.0
    %906 = vmatmul.mubr.f32.gmra.mxu0 %v809
    %v907 = vpop.f32.mrf.mxu0
    %v908 = vadd.f32 %v834, %v907
    %v909 = vpop.f32.mrf.mxu0
    %910 = vmatprep.mubr.f32.mxu0 0.0
    %911 = vmatmul.mubr.f32.gmra.mxu0 %v810
    %v912 = vpop.f32.mrf.mxu0
    %v913 = vadd.f32 %v834, %v912
    %v914 = vpop.f32.mrf.mxu0
    %915 = vdwg.mxu0
    %v916 = vmax.f32 %v903, 0.0
    %v917 = vmax.f32 %v908, 0.0
    %v918 = vmax.f32 %v913, 0.0
    %s919 = scalar_lea.vmem [#allocation8], 640
    %v920 = vld [vmem:[%s919] sm:$0xff]
    %v921 = vld [vmem:[%s919 + $0x8] sm:$0xff]
    %v922 = vld [vmem:[%s919 + $0x10] sm:$0xff]
    %v923 = vld [vmem:[%s919 + $0x18] sm:$0xff]
    %v924 = vld [vmem:[%s919 + $0x20] sm:$0xff]
    %v925 = vld [vmem:[%s919 + $0x28] sm:$0xff]
    %v926 = vld [vmem:[%s919 + $0x30] sm:$0xff]
    %v927 = vld [vmem:[%s919 + $0x38] sm:$0xff]
    %v928 = vld [vmem:[%s919 + $0x40] sm:$0xff]
    %v929 = vld [vmem:[%s919 + $0x48] sm:$0xff]
    %v930 = vld [vmem:[%s919 + $0x50] sm:$0xff]
    %v931 = vld [vmem:[%s919 + $0x58] sm:$0xff]
    %v932 = vld [vmem:[%s919 + $0x60] sm:$0xff]
    %v933 = vld [vmem:[%s919 + $0x68] sm:$0xff]
    %v934 = vld [vmem:[%s919 + $0x70] sm:$0xff]
    %v935 = vld [vmem:[%s919 + $0x78] sm:$0xff]
    %s936 = scalar_lea.vmem [#allocation10], 14
    %v937 = vld [vmem:[%s936] sm:$0x1]
    %v939 = vlaneseq
    %v940 = vshrl.u32 %v939, 7
    %v941 = vsub.s32 0, %v940
    %v942 = vrot.slane %v937, %v941
    %944 = vmatprep.subr.mxu0 0.0
    %945 = vmatpush1.msra.mxu0 %v935
    %946 = vmatprep.subr.mxu0 0.0
    %947 = vmatpush1.msra.mxu0 %v934
    %948 = vmatprep.subr.mxu0 0.0
    %949 = vmatpush1.msra.mxu0 %v933
    %950 = vmatprep.subr.mxu0 0.0
    %951 = vmatpush1.msra.mxu0 %v932
    %952 = vmatprep.subr.mxu0 0.0
    %953 = vmatpush1.msra.mxu0 %v931
    %954 = vmatprep.subr.mxu0 0.0
    %955 = vmatpush1.msra.mxu0 %v930
    %956 = vmatprep.subr.mxu0 0.0
    %957 = vmatpush1.msra.mxu0 %v929
    %958 = vmatprep.subr.mxu0 0.0
    %959 = vmatpush1.msra.mxu0 %v928
    %960 = vmatprep.subr.mxu0 0.0
    %961 = vmatpush1.msra.mxu0 %v927
    %962 = vmatprep.subr.mxu0 0.0
    %963 = vmatpush1.msra.mxu0 %v926
    %964 = vmatprep.subr.mxu0 0.0
    %965 = vmatpush1.msra.mxu0 %v925
    %966 = vmatprep.subr.mxu0 0.0
    %967 = vmatpush1.msra.mxu0 %v924
    %968 = vmatprep.subr.mxu0 0.0
    %969 = vmatpush1.msra.mxu0 %v923
    %970 = vmatprep.subr.mxu0 0.0
    %971 = vmatpush1.msra.mxu0 %v922
    %972 = vmatprep.subr.mxu0 0.0
    %973 = vmatpush1.msra.mxu0 %v921
    %974 = vmatprep.subr.mxu0 0.0
    %975 = vmatpush1.msra.mxu0 %v920
    %976 = vmatprep.subr.mxu0 0.0
    %977 = vmatpush2.msra.mxu0 0.0
    %978 = vmatprep.subr.mxu0 0.0
    %979 = vmatpush2.msra.mxu0 0.0
    %980 = vmatprep.subr.mxu0 0.0
    %981 = vmatpush2.msra.mxu0 0.0
    %982 = vmatprep.subr.mxu0 0.0
    %983 = vmatpush2.msra.mxu0 0.0
    %984 = vmatprep.subr.mxu0 0.0
    %985 = vmatpush2.msra.mxu0 0.0
    %986 = vmatprep.subr.mxu0 0.0
    %987 = vmatpush2.msra.mxu0 0.0
    %988 = vmatprep.subr.mxu0 0.0
    %989 = vmatpush2.msra.mxu0 0.0
    %990 = vmatprep.subr.mxu0 0.0
    %991 = vmatpush2.msra.mxu0 0.0
    %992 = vmatprep.subr.mxu0 0.0
    %993 = vmatpush2.msra.mxu0 0.0
    %994 = vmatprep.subr.mxu0 0.0
    %995 = vmatpush2.msra.mxu0 0.0
    %996 = vmatprep.subr.mxu0 0.0
    %997 = vmatpush2.msra.mxu0 0.0
    %998 = vmatprep.subr.mxu0 0.0
    %999 = vmatpush2.msra.mxu0 0.0
    %1000 = vmatprep.subr.mxu0 0.0
    %1001 = vmatpush2.msra.mxu0 0.0
    %1002 = vmatprep.subr.mxu0 0.0
    %1003 = vmatpush2.msra.mxu0 0.0
    %1004 = vmatprep.subr.mxu0 0.0
    %1005 = vmatpush2.msra.mxu0 0.0
    %1006 = vmatprep.subr.mxu0 0.0
    %1007 = vmatpush2.msra.mxu0 0.0
    %1008 = vmatprep.mubr.f32.mxu0 0.0
    %1009 = vmatmul.mubr.f32.gmra.mxu0 %v916
    %v1010 = vpop.f32.mrf.mxu0
    %v1011 = vadd.f32 %v942, %v1010
    %v1012 = vpop.f32.mrf.mxu0
    %1013 = vmatprep.mubr.f32.mxu0 0.0
    %1014 = vmatmul.mubr.f32.gmra.mxu0 %v917
    %v1015 = vpop.f32.mrf.mxu0
    %v1016 = vadd.f32 %v942, %v1015
    %v1017 = vpop.f32.mrf.mxu0
    %1018 = vmatprep.mubr.f32.mxu0 0.0
    %1019 = vmatmul.mubr.f32.gmra.mxu0 %v918
    %v1020 = vpop.f32.mrf.mxu0
    %v1021 = vadd.f32 %v942, %v1020
    %v1022 = vpop.f32.mrf.mxu0
    %1023 = vdwg.mxu0
    %1024 = vst [vmem:[#allocation11] sm:$0xff] %v1011
    %1025 = vst [vmem:[#allocation11 + $0x8] sm:$0xff] %v1016
    %1026 = vst [vmem:[#allocation11 + $0x10] sm:$0xff] %v1021
    // Predicated region
    $region42: #{deeper_sparse_point_assoc_forward.1} parent=1 // pred_check
      _
    $region43: #{deeper_sparse_point_assoc_forward.1} parent=1 // pred_check_branch
      %1028 = sbr.rel (0) target = $region45
    $region44: #{deeper_sparse_point_assoc_forward.1} parent=1 // pred_region
      %s1030 = ssub.s32 384, 384
      %1031 = vsyncadd [#allocation4], %s1030
      %s1032 = sshll.u32 [#allocation11], 4
      %s1033 = int_to_ptr.vmem [resolvable:$true] %s1032
      %1038 = dma.vmem_to_hbm [thread:$0]  %s1033, 384, %s5, [#allocation4], 128, 128, 8
    $region45: #{deeper_sparse_point_assoc_forward.1} parent=1 // pred_fallthru
      _
    // Predicated region
    $region46: #{deeper_sparse_point_assoc_forward.1} parent=1 // pred_check
      _
    $region47: #{deeper_sparse_point_assoc_forward.1} parent=1 // pred_check_branch
      %1040 = sbr.rel (0) target = $region49
    $region48: #{deeper_sparse_point_assoc_forward.1} parent=1 // pred_region
      %1041 = dma.done [#allocation4], 384
    $region49: #{deeper_sparse_point_assoc_forward.1} parent=1 // pred_fallthru
      _
    %1042 = vsyncpa [#allocation3], 1
    %1043 = vsyncpa [#allocation6], 1
    %1044 = vsyncpa [#allocation9], 1
    %1045 = vsyncpa [#allocation4], 1

</llo_original>
